<compile_context>
chip_gen: v6e
topology: v6e:2x2x1
jax: 0.10.0
libtpu: 0.0.40
codegen_flags: <defaults>
</compile_context>

<pallas_src>
import functools

import jax
import jax.numpy as jnp
from jax import lax
from jax.experimental import pallas as pl
from jax.experimental.pallas import tpu as pltpu


def _triplet_semihard_kernel(t_col_ref, t_row_ref, x_ref, loss_ref, *, margin):
    X = x_ref[...].astype(jnp.float32)                      # (B, E)
    B = X.shape[0]

    # L2-normalize embeddings (matches torch.nn.functional.normalize).
    xn = X * lax.rsqrt(jnp.sum(X * X, axis=1, keepdims=True) + 1e-12)

    # cos[i, j] = <xn_i, xn_j> on the MXU; contraction expressed directly
    # (no materialized transpose of the second operand).
    cos = lax.dot_general(
        xn, xn,
        dimension_numbers=(((1,), (1,)), ((), ())),
        preferred_element_type=jnp.float32,
    )                                                        # (B, B)

    # Euclidean distance of normalized embeddings: ||a-b||^2 = 2 - 2*cos.
    d = jnp.sqrt(jnp.maximum(2.0 - 2.0 * cos, 0.0))          # (B, B), symmetric

    t_col = t_col_ref[...]                                   # (B, 1) int32
    t_row = t_row_ref[...]                                   # (1, B) int32
    same = (t_col == t_row)                                  # (B, B) bool, symmetric

    sub_iota = lax.broadcasted_iota(jnp.int32, (B, B), 0)
    lane_iota = lax.broadcasted_iota(jnp.int32, (B, B), 1)
    not_diag = sub_iota != lane_iota

    pos_f = jnp.where(same & not_diag, 1.0, 0.0)             # positives mask (symmetric)
    neg_f = jnp.where(same, 0.0, 1.0)                        # negatives mask (symmetric)

    margin_f = jnp.float32(margin)

    def body(a, carry):
        s, c = carry
        sel_row = sub_iota == a                              # picks row a
        sel_col = lane_iota == a                             # picks column a

        # an_row[0, n]  = D[a, n];   neg_row[0, n] = 1 if labels[n] != labels[a]
        an_row = jnp.sum(jnp.where(sel_row, d, 0.0), axis=0, keepdims=True)      # (1, B)
        neg_row = jnp.sum(jnp.where(sel_row, neg_f, 0.0), axis=0, keepdims=True)  # (1, B)
        # ap_col[p, 0]  = D[p, a] = D[a, p] (symmetry); pos_col = positive mask
        ap_col = jnp.sum(jnp.where(sel_col, d, 0.0), axis=1, keepdims=True)       # (B, 1)
        pos_col = jnp.sum(jnp.where(sel_col, pos_f, 0.0), axis=1, keepdims=True)  # (B, 1)

        # diff[p, n] = D[a, n] - D[a, p]  (an_dist - ap_dist)
        diff = an_row - ap_col                               # (B, B)

        # Semihard miner: 0 < diff <= margin.
        semihard = (diff > 0.0) & (diff <= margin_f)
        # TripletMarginLoss violation: relu(ap - an + margin) = relu(margin - diff)
        viol = margin_f - diff
        # AvgNonZeroReducer keeps only strictly positive losses.
        keep = semihard & (viol > 0.0)

        w = pos_col * neg_row * jnp.where(keep, 1.0, 0.0)    # (B, B) triplet indicator
        s = s + jnp.sum(w * viol, keepdims=True)             # (1, 1)
        c = c + jnp.sum(w, keepdims=True)                    # (1, 1)
        return s, c

    s0 = jnp.zeros((1, 1), jnp.float32)
    c0 = jnp.zeros((1, 1), jnp.float32)
    s, c = lax.fori_loop(0, B, body, (s0, c0))

    # Mean over contributing triplets; 0.0 if there are none (s == 0 then).
    loss_ref[...] = s / jnp.maximum(c, 1.0)


def triplet_loss(embeddings, labels, *, margin=0.1):
    """Forward pass of the PyTorch TripletLoss module (semihard mining)."""
    B, E = embeddings.shape
    t_col = labels.reshape(B, 1).astype(jnp.int32)
    t_row = labels.reshape(1, B).astype(jnp.int32)   # lane-major labels for vector masks

    kernel = functools.partial(_triplet_semihard_kernel, margin=float(margin))

    out = pl.pallas_call(
        kernel,
        out_shape=jax.ShapeDtypeStruct((1, 1), jnp.float32),
        in_specs=[
            pl.BlockSpec(memory_space=pltpu.MemorySpace.VMEM),  # labels (B, 1)
            pl.BlockSpec(memory_space=pltpu.MemorySpace.VMEM),  # labels (1, B)
            pl.BlockSpec(memory_space=pltpu.MemorySpace.VMEM),  # embeddings (B, E)
        ],
        out_specs=pl.BlockSpec(memory_space=pltpu.MemorySpace.VMEM),
        cost_estimate=pl.CostEstimate(
            flops=2 * B * B * E + 14 * B * B * B,
            transcendentals=B * B + B,
            bytes_accessed=4 * B * E + 2 * 4 * B + 4,
        ),
    )(t_col, t_row, embeddings)
    return out[0, 0]


def _reference_triplet_loss(embeddings, labels, margin=0.1):
    """Pure-JAX mirror of TripletMarginMiner('semihard') + TripletMarginLoss."""
    x = embeddings / jnp.sqrt(jnp.sum(embeddings * embeddings, axis=1, keepdims=True) + 1e-12)
    d = jnp.sqrt(jnp.sum((x[:, None, :] - x[None, :, :]) ** 2, axis=-1))
    B = embeddings.shape[0]
    same = labels[:, None] == labels[None, :]
    pos = same & ~jnp.eye(B, dtype=bool)                 # [a, p]
    neg = ~same                                          # [a, n]
    ap = d[:, :, None]                                   # D[a, p]
    an = d[:, None, :]                                   # D[a, n]
    valid = pos[:, :, None] & neg[:, None, :]
    tm = an - ap
    mined = valid & (tm > 0.0) & (tm <= margin)          # semihard miner
    viol = jnp.maximum(ap - an + margin, 0.0)            # TripletMarginLoss
    keep = mined & (viol > 0.0)                          # AvgNonZeroReducer
    s = jnp.sum(jnp.where(keep, viol, 0.0))
    c = jnp.sum(keep.astype(jnp.float32))
    return jnp.where(c > 0.0, s / jnp.maximum(c, 1.0), 0.0)


if __name__ == "__main__":
    batch = 16
    sz_embed = 32
    n_classes = 4
    margin = 0.1

    key = jax.random.PRNGKey(0)
    kx, kt = jax.random.split(key)
    X = jax.random.normal(kx, (batch, sz_embed), dtype=jnp.float32)
    T = jax.random.randint(kt, (batch,), 0, n_classes, dtype=jnp.int32)

    loss = jax.block_until_ready(triplet_loss(X, T, margin=margin))
    ref = _reference_triplet_loss(X, T, margin=margin)
    assert jnp.allclose(loss, ref, rtol=1e-4, atol=1e-5), (loss, ref)

    print("KERNEL_OK")
</pallas_src>

<mosaic_0001>
module attributes {stable_mosaic.version = 11 : i64} {
  func.func @_triplet_semihard_kernel(%arg0: memref<16x1xi32, #tpu.memory_space<vmem>>, %arg1: memref<1x16xi32, #tpu.memory_space<vmem>>, %arg2: memref<16x32xf32, #tpu.memory_space<vmem>>, %arg3: memref<1x1xf32, #tpu.memory_space<vmem>>) attributes {dimension_semantics = [], scalar_prefetch = 0 : i64, scratch_operands = 0 : i64, tpu.core_type = #tpu.core_type<tc>} {
    %c0 = arith.constant 0 : index
    %c0_0 = arith.constant 0 : index
    %0 = vector.load %arg2[%c0, %c0_0] : memref<16x32xf32, #tpu.memory_space<vmem>>, vector<16x32xf32>
    %1 = arith.mulf %0, %0 : vector<16x32xf32>
    %cst = arith.constant dense<0.000000e+00> : vector<16xf32>
    %2 = vector.multi_reduction <add>, %1, %cst [1] : vector<16x32xf32> to vector<16xf32>
    %3 = vector.shape_cast %2 : vector<16xf32> to vector<16x1xf32>
    %cst_1 = arith.constant 9.99999996E-13 : f32
    %4 = vector.broadcast %cst_1 : f32 to vector<16x1xf32>
    %5 = arith.addf %3, %4 : vector<16x1xf32>
    %6 = math.rsqrt %5 : vector<16x1xf32>
    %7 = vector.broadcast %6 : vector<16x1xf32> to vector<16x32xf32>
    %8 = arith.mulf %0, %7 : vector<16x32xf32>
    %cst_2 = arith.constant dense<0.000000e+00> : vector<16x16xf32>
    %9 = tpu.matmul %8, %8, %cst_2 {dimension_numbers = #tpu.dot_dimension_numbers<[1], [1], [0], [0], [0, 0, 1, 0], [], []>} : vector<16x32xf32>, vector<16x32xf32>, vector<16x16xf32> -> vector<16x16xf32>
    %cst_3 = arith.constant 2.000000e+00 : f32
    %10 = vector.broadcast %cst_3 : f32 to vector<16x16xf32>
    %11 = arith.mulf %10, %9 : vector<16x16xf32>
    %cst_4 = arith.constant 2.000000e+00 : f32
    %12 = vector.broadcast %cst_4 : f32 to vector<16x16xf32>
    %13 = arith.subf %12, %11 : vector<16x16xf32>
    %cst_5 = arith.constant 0.000000e+00 : f32
    %14 = vector.broadcast %cst_5 : f32 to vector<16x16xf32>
    %15 = arith.maximumf %13, %14 : vector<16x16xf32>
    %16 = math.sqrt %15 : vector<16x16xf32>
    %c0_6 = arith.constant 0 : index
    %c0_7 = arith.constant 0 : index
    %17 = vector.load %arg0[%c0_6, %c0_7] : memref<16x1xi32, #tpu.memory_space<vmem>>, vector<16x1xi32>
    %c0_8 = arith.constant 0 : index
    %c0_9 = arith.constant 0 : index
    %18 = vector.load %arg1[%c0_8, %c0_9] : memref<1x16xi32, #tpu.memory_space<vmem>>, vector<1x16xi32>
    %19 = vector.broadcast %17 : vector<16x1xi32> to vector<16x16xi32>
    %20 = vector.broadcast %18 : vector<1x16xi32> to vector<16x16xi32>
    %21 = arith.cmpi eq, %19, %20 : vector<16x16xi32>
    %22 = tpu.iota {dimensions = array<i32: 0>} : vector<16x16xi32>
    %23 = tpu.iota {dimensions = array<i32: 1>} : vector<16x16xi32>
    %24 = arith.cmpi ne, %22, %23 : vector<16x16xi32>
    %25 = arith.andi %21, %24 : vector<16x16xi1>
    %cst_10 = arith.constant 1.000000e+00 : f32
    %cst_11 = arith.constant 0.000000e+00 : f32
    %26 = vector.broadcast %cst_10 : f32 to vector<16x16xf32>
    %27 = vector.broadcast %cst_11 : f32 to vector<16x16xf32>
    %28 = arith.select %25, %26, %27 : vector<16x16xi1>, vector<16x16xf32>
    %cst_12 = arith.constant 0.000000e+00 : f32
    %cst_13 = arith.constant 1.000000e+00 : f32
    %29 = vector.broadcast %cst_12 : f32 to vector<16x16xf32>
    %30 = vector.broadcast %cst_13 : f32 to vector<16x16xf32>
    %31 = arith.select %21, %29, %30 : vector<16x16xi1>, vector<16x16xf32>
    %cst_14 = arith.constant 0.000000e+00 : f32
    %32 = vector.broadcast %cst_14 : f32 to vector<1x1xf32>
    %cst_15 = arith.constant 0.000000e+00 : f32
    %33 = vector.broadcast %cst_15 : f32 to vector<1x1xf32>
    %cst_16 = arith.constant 1.000000e-01 : f32
    %c0_i32 = arith.constant 0 : i32
    %c16_i32 = arith.constant 16 : i32
    %34 = arith.addi %c0_i32, %c16_i32 : i32
    %c1_i32 = arith.constant 1 : i32
    %35:2 = scf.for %arg4 = %c0_i32 to %34 step %c1_i32 iter_args(%arg5 = %32, %arg6 = %33) -> (vector<1x1xf32>, vector<1x1xf32>)  : i32 {
      %40 = vector.broadcast %arg4 : i32 to vector<16x16xi32>
      %41 = arith.cmpi eq, %22, %40 : vector<16x16xi32>
      %42 = vector.broadcast %arg4 : i32 to vector<16x16xi32>
      %43 = arith.cmpi eq, %23, %42 : vector<16x16xi32>
      %cst_21 = arith.constant 0.000000e+00 : f32
      %44 = vector.broadcast %cst_21 : f32 to vector<16x16xf32>
      %45 = arith.select %41, %16, %44 : vector<16x16xi1>, vector<16x16xf32>
      %cst_22 = arith.constant dense<0.000000e+00> : vector<16xf32>
      %46 = vector.multi_reduction <add>, %45, %cst_22 [0] : vector<16x16xf32> to vector<16xf32>
      %47 = vector.shape_cast %46 : vector<16xf32> to vector<1x16xf32>
      %cst_23 = arith.constant 0.000000e+00 : f32
      %48 = vector.broadcast %cst_23 : f32 to vector<16x16xf32>
      %49 = arith.select %41, %31, %48 : vector<16x16xi1>, vector<16x16xf32>
      %cst_24 = arith.constant dense<0.000000e+00> : vector<16xf32>
      %50 = vector.multi_reduction <add>, %49, %cst_24 [0] : vector<16x16xf32> to vector<16xf32>
      %51 = vector.shape_cast %50 : vector<16xf32> to vector<1x16xf32>
      %cst_25 = arith.constant 0.000000e+00 : f32
      %52 = vector.broadcast %cst_25 : f32 to vector<16x16xf32>
      %53 = arith.select %43, %16, %52 : vector<16x16xi1>, vector<16x16xf32>
      %cst_26 = arith.constant dense<0.000000e+00> : vector<16xf32>
      %54 = vector.multi_reduction <add>, %53, %cst_26 [1] : vector<16x16xf32> to vector<16xf32>
      %55 = vector.shape_cast %54 : vector<16xf32> to vector<16x1xf32>
      %cst_27 = arith.constant 0.000000e+00 : f32
      %56 = vector.broadcast %cst_27 : f32 to vector<16x16xf32>
      %57 = arith.select %43, %28, %56 : vector<16x16xi1>, vector<16x16xf32>
      %cst_28 = arith.constant dense<0.000000e+00> : vector<16xf32>
      %58 = vector.multi_reduction <add>, %57, %cst_28 [1] : vector<16x16xf32> to vector<16xf32>
      %59 = vector.shape_cast %58 : vector<16xf32> to vector<16x1xf32>
      %60 = vector.broadcast %47 : vector<1x16xf32> to vector<16x16xf32>
      %61 = vector.broadcast %55 : vector<16x1xf32> to vector<16x16xf32>
      %62 = arith.subf %60, %61 : vector<16x16xf32>
      %cst_29 = arith.constant 0.000000e+00 : f32
      %63 = vector.broadcast %cst_29 : f32 to vector<16x16xf32>
      %64 = arith.cmpf ogt, %62, %63 : vector<16x16xf32>
      %65 = vector.broadcast %cst_16 : f32 to vector<16x16xf32>
      %66 = arith.cmpf ole, %62, %65 : vector<16x16xf32>
      %67 = arith.andi %64, %66 : vector<16x16xi1>
      %68 = vector.broadcast %cst_16 : f32 to vector<16x16xf32>
      %69 = arith.subf %68, %62 : vector<16x16xf32>
      %cst_30 = arith.constant 0.000000e+00 : f32
      %70 = vector.broadcast %cst_30 : f32 to vector<16x16xf32>
      %71 = arith.cmpf ogt, %69, %70 : vector<16x16xf32>
      %72 = arith.andi %67, %71 : vector<16x16xi1>
      %73 = vector.broadcast %59 : vector<16x1xf32> to vector<16x16xf32>
      %74 = vector.broadcast %51 : vector<1x16xf32> to vector<16x16xf32>
      %75 = arith.mulf %73, %74 : vector<16x16xf32>
      %cst_31 = arith.constant 1.000000e+00 : f32
      %cst_32 = arith.constant 0.000000e+00 : f32
      %76 = vector.broadcast %cst_31 : f32 to vector<16x16xf32>
      %77 = vector.broadcast %cst_32 : f32 to vector<16x16xf32>
      %78 = arith.select %72, %76, %77 : vector<16x16xi1>, vector<16x16xf32>
      %79 = arith.mulf %75, %78 : vector<16x16xf32>
      %80 = arith.mulf %79, %69 : vector<16x16xf32>
      %81 = vector.shape_cast %80 : vector<16x16xf32> to vector<1x16x16xf32>
      %cst_33 = arith.constant dense<0.000000e+00> : vector<1xf32>
      %82 = vector.multi_reduction <add>, %81, %cst_33 [1, 2] : vector<1x16x16xf32> to vector<1xf32>
      %83 = vector.shape_cast %82 : vector<1xf32> to vector<1x1x1xf32>
      %84 = vector.extract %83[0, 0, 0] : f32 from vector<1x1x1xf32>
      %85 = vector.broadcast %84 : f32 to vector<1x1xf32>
      %86 = arith.addf %arg5, %85 : vector<1x1xf32>
      %87 = vector.shape_cast %79 : vector<16x16xf32> to vector<1x16x16xf32>
      %cst_34 = arith.constant dense<0.000000e+00> : vector<1xf32>
      %88 = vector.multi_reduction <add>, %87, %cst_34 [1, 2] : vector<1x16x16xf32> to vector<1xf32>
      %89 = vector.shape_cast %88 : vector<1xf32> to vector<1x1x1xf32>
      %90 = vector.extract %89[0, 0, 0] : f32 from vector<1x1x1xf32>
      %91 = vector.broadcast %90 : f32 to vector<1x1xf32>
      %92 = arith.addf %arg6, %91 : vector<1x1xf32>
      scf.yield %86, %92 : vector<1x1xf32>, vector<1x1xf32>
    }
    %c16_i32_17 = arith.constant 16 : i32
    %cst_18 = arith.constant 1.000000e+00 : f32
    %36 = vector.broadcast %cst_18 : f32 to vector<1x1xf32>
    %37 = arith.maximumf %35#1, %36 : vector<1x1xf32>
    %38 = arith.divf %35#0, %37 : vector<1x1xf32>
    %c0_19 = arith.constant 0 : index
    %c0_20 = arith.constant 0 : index
    %39 = vector.load %arg3[%c0_19, %c0_20] : memref<1x1xf32, #tpu.memory_space<vmem>>, vector<1x1xf32>
    tpu.vector_store %arg3[%c0_19, %c0_20], %38 {strides = array<i32>} : memref<1x1xf32, #tpu.memory_space<vmem>>, vector<1x1xf32>,
    return
  }
}

</mosaic_0001>

<llo_original>
// kernel: tpu_custom_call.1
$region0: #{tpu_custom_call.1}
  #allocation0 [shape = 'u32[]', space=smem, size = 0x4, offset = 0x4, fixed_abs, tag = 'smem constant byte address 0x4 - core index']
  #allocation1 [shape = 'u32[144,128]{1,0:T(1,128)}', space=vmem, size = 0x12000, scoped, tag = 'internal scratch']
  %s0 = inlined_call_operand.vmem [shape: s32[16,1], index: 0, kind: input, shape index: {}]
  %s1 = inlined_call_operand.vmem [shape: s32[1,16], index: 1, kind: input, shape index: {}]
  %s2 = inlined_call_operand.vmem [shape: f32[16,32], index: 2, kind: input, shape index: {}]
  %s3 = inlined_call_operand.hbm [shape: f32[1,1], index: 3, kind: output, shape index: {}]
  %s4 = sld [smem:[#allocation0]]
  $region29: #{tpu_custom_call.1} parent=0
    _
  %s6 = ssub.s32 1, %s4
  %s7 = scalar_select 0, %s6, %s4
  $region1: #{tpu_custom_call.1} parent=0
    #allocation2 [shape = 'u8[512]{0}', space=vmem, size = 0x400, scoped, tag = 'output window, operand 0, single buffered']
    #allocation3 [shape = 's32[1]{0}', space=sflag, size = 0x4, scoped, tag = 'scoped memory for tpu_custom_call.1']
    %8 = vsyncpa [#allocation3], 0
    // Predicated region
    $region2: #{tpu_custom_call.1} parent=1 // pred_check
      _
    $region3: #{tpu_custom_call.1} parent=1 // pred_check_branch
      %10 = sbr.rel (0) target = $region5
    $region4: #{tpu_custom_call.1} parent=1 // pred_region
      _
    $region5: #{tpu_custom_call.1} parent=1 // pred_fallthru
      _
    // Predicated region
    $region6: #{tpu_custom_call.1} parent=1 // pred_check
      _
    $region7: #{tpu_custom_call.1} parent=1 // pred_check_branch
      %12 = sbr.rel (0) target = $region9
    $region8: #{tpu_custom_call.1} parent=1 // pred_region
      _
    $region9: #{tpu_custom_call.1} parent=1 // pred_fallthru
      _
    // Predicated region
    $region10: #{tpu_custom_call.1} parent=1 // pred_check
      _
    $region11: #{tpu_custom_call.1} parent=1 // pred_check_branch
      %14 = sbr.rel (0) target = $region13
    $region12: #{tpu_custom_call.1} parent=1 // pred_region
      _
    $region13: #{tpu_custom_call.1} parent=1 // pred_fallthru
      _
    %v15 = vld [vmem:[%s2] sm:$0xff]
    %v16 = vld [vmem:[%s2 + $0x8] sm:$0xff]
    %v17 = vmul.f32 %v15, %v15
    %v18 = vmul.f32 %v16, %v16
    %vm19 = vcmask 261120
    %v20 = vsel %vm19, %v17, 0.0
    %21 = vadd.xlane.f32.xlu0 %v20
    %v22 = vpop.xlane.xlu0 %21
    %v23 = vsel %vm19, %v18, 0.0
    %24 = vadd.xlane.f32.xlu0 %v23
    %v25 = vpop.xlane.xlu0 %24
    %v26 = vadd.f32 %v22, 1e-12
    %v27 = vadd.f32 %v25, 1e-12
    %v28 = vrsqrt.pop %v26
    %v29 = vrsqrt.pop %v27
    %v30 = vmul.f32 %v15, %v28
    %v31 = vmul.f32 %v16, %v29
    %v33 = vsel %vm19, %v30, 0
    %v36 = vsel %vm19, %v31, 0
    %38 = vmatprep.subr.mxu0 0.0
    %39 = vmatpush1.xpose.msra.mxu0 0.0
    %40 = vmatprep.subr.mxu0 0.0
    %41 = vmatpush1.xpose.msra.mxu0 0.0
    %42 = vmatprep.subr.mxu0 0.0
    %43 = vmatpush1.xpose.msra.mxu0 0.0
    %44 = vmatprep.subr.mxu0 0.0
    %45 = vmatpush1.xpose.msra.mxu0 0.0
    %46 = vmatprep.subr.mxu0 0.0
    %47 = vmatpush1.xpose.msra.mxu0 0.0
    %48 = vmatprep.subr.mxu0 0.0
    %49 = vmatpush1.xpose.msra.mxu0 0.0
    %50 = vmatprep.subr.mxu0 0.0
    %51 = vmatpush1.xpose.msra.mxu0 0.0
    %52 = vmatprep.subr.mxu0 0.0
    %53 = vmatpush1.xpose.msra.mxu0 0.0
    %54 = vmatprep.subr.mxu0 0.0
    %55 = vmatpush1.xpose.msra.mxu0 0.0
    %56 = vmatprep.subr.mxu0 0.0
    %57 = vmatpush1.xpose.msra.mxu0 0.0
    %58 = vmatprep.subr.mxu0 0.0
    %59 = vmatpush1.xpose.msra.mxu0 0.0
    %60 = vmatprep.subr.mxu0 0.0
    %61 = vmatpush1.xpose.msra.mxu0 0.0
    %62 = vmatprep.subr.mxu0 0.0
    %63 = vmatpush1.xpose.msra.mxu0 0.0
    %64 = vmatprep.subr.mxu0 0.0
    %65 = vmatpush1.xpose.msra.mxu0 0.0
    %66 = vmatprep.subr.mxu0 0.0
    %67 = vmatpush1.xpose.msra.mxu0 %v36
    %68 = vmatprep.subr.mxu0 0.0
    %69 = vmatpush1.xpose.msra.mxu0 %v33
    %70 = vmatprep.subr.mxu0 0.0
    %71 = vmatpush2.xpose.msra.mxu0 0.0
    %72 = vmatprep.subr.mxu0 0.0
    %73 = vmatpush2.xpose.msra.mxu0 0.0
    %74 = vmatprep.subr.mxu0 0.0
    %75 = vmatpush2.xpose.msra.mxu0 0.0
    %76 = vmatprep.subr.mxu0 0.0
    %77 = vmatpush2.xpose.msra.mxu0 0.0
    %78 = vmatprep.subr.mxu0 0.0
    %79 = vmatpush2.xpose.msra.mxu0 0.0
    %80 = vmatprep.subr.mxu0 0.0
    %81 = vmatpush2.xpose.msra.mxu0 0.0
    %82 = vmatprep.subr.mxu0 0.0
    %83 = vmatpush2.xpose.msra.mxu0 0.0
    %84 = vmatprep.subr.mxu0 0.0
    %85 = vmatpush2.xpose.msra.mxu0 0.0
    %86 = vmatprep.subr.mxu0 0.0
    %87 = vmatpush2.xpose.msra.mxu0 0.0
    %88 = vmatprep.subr.mxu0 0.0
    %89 = vmatpush2.xpose.msra.mxu0 0.0
    %90 = vmatprep.subr.mxu0 0.0
    %91 = vmatpush2.xpose.msra.mxu0 0.0
    %92 = vmatprep.subr.mxu0 0.0
    %93 = vmatpush2.xpose.msra.mxu0 0.0
    %94 = vmatprep.subr.mxu0 0.0
    %95 = vmatpush2.xpose.msra.mxu0 0.0
    %96 = vmatprep.subr.mxu0 0.0
    %97 = vmatpush2.xpose.msra.mxu0 0.0
    %98 = vmatprep.subr.mxu0 0.0
    %99 = vmatpush2.xpose.msra.mxu0 0.0
    %100 = vmatprep.subr.mxu0 0.0
    %101 = vmatpush2.xpose.msra.mxu0 0.0
    %102 = vmatprep.mubr.f32.mxu0 0.0
    %103 = vmatmul.mubr.f32.gmra.mxu0 %v33
    %v104 = vpop.f32.mrf.mxu0
    %v105 = vadd.f32 0.0, %v104
    %v106 = vpop.f32.mrf.mxu0
    %107 = vmatprep.mubr.f32.mxu0 0.0
    %108 = vmatmul.mubr.f32.gmra.mxu0 %v36
    %v109 = vpop.f32.mrf.mxu0
    %v110 = vadd.f32 0.0, %v109
    %v111 = vpop.f32.mrf.mxu0
    %112 = vdwg.mxu0
    %v113 = vmul.f32 %v105, 2.0
    %v114 = vmul.f32 %v110, 2.0
    %v115 = vsub.f32 2.0, %v113
    %v116 = vsub.f32 2.0, %v114
    %v117 = vmax.f32 %v115, 0.0
    %v118 = vmax.f32 %v116, 0.0
    %v119 = vrsqrt.pop %v117
    %v120 = vmul.f32 %v117, %v119
    %vm121 = vcmp.eq.f32.partialorder %v117, inf
    %v122 = vsel %vm121, %v117, %v120
    %vm123 = vcmp.eq.f32.partialorder %v117, 0.0
    %v124 = vand.u32 %v117, 2147483648
    %v125 = vsel %vm123, %v124, %v122
    %v126 = vrsqrt.pop %v118
    %v127 = vmul.f32 %v118, %v126
    %vm128 = vcmp.eq.f32.partialorder %v118, inf
    %v129 = vsel %vm128, %v118, %v127
    %vm130 = vcmp.eq.f32.partialorder %v118, 0.0
    %v131 = vand.u32 %v118, 2147483648
    %v132 = vsel %vm130, %v131, %v129
    %v133 = vld [vmem:[%s0] sm:$0xff]
    %v134 = vld [vmem:[%s0 + $0x8] sm:$0xff]
    %v135 = vld [vmem:[%s1] sm:$0x1]
    %136 = vset.pattern.permute.xlu0 0
    %137 = vperm.xlu0 %136, %v133
    %v138 = vpop.permute.xlu0 %137
    %139 = vset.pattern.permute.xlu0 0
    %140 = vperm.xlu0 %139, %v134
    %v141 = vpop.permute.xlu0 %140
    %v142 = vlaneseq
    %v143 = vshrl.u32 %v142, 7
    %v144 = vsub.s32 0, %v143
    %v145 = vrot.slane %v135, %v144
    %vm146 = vcmp.eq.s32.totalorder %v138, %v145
    %vm147 = vcmp.eq.s32.totalorder %v141, %v145
    %v148 = vlaneseq
    %v149 = vshrl.u32 %v148, 7
    %v150 = vadd.s32 %v149, 8
    %v151 = vlaneseq
    %v152 = vand.u32 %v151, 127
    %vm153 = vcmp.ne.s32.totalorder %v149, %v152
    %vm154 = vcmp.ne.s32.totalorder %v150, %v152
    %vm155 = vmand %vm146, %vm153
    %vm156 = vmand %vm147, %vm154
    %v157 = vsel %vm155, 1.0, 0.0
    %v158 = vsel %vm156, 1.0, 0.0
    %v159 = vsel %vm146, 0.0, 1.0
    %v160 = vsel %vm147, 0.0, 1.0
    loop: start=0, step=1, limit=16
    $region14: #{tpu_custom_call.1} parent=1 // loop_pre_header
      _
    $region15: #{tpu_custom_call.1} parent=1 // loop_header
      %s162 = sphi 0, %s166
      %p163 = scmp.ge.s32.totalorder %s162, 16
      %v167 = vphi 0.0, %v247
      %v168 = vphi 0.0, %v261
    $region16: #{tpu_custom_call.1} parent=1 // loop_header_branch
      %165 = sbr.rel (%p163) target = $region20
    $region17: #{tpu_custom_call.1} parent=1 // loop_body
      %v169 = vstv %s162
      %vm170 = vcmp.eq.s32.totalorder %v149, %v169
      %vm171 = vcmp.eq.s32.totalorder %v150, %v169
      %vm172 = vcmp.eq.s32.totalorder %v152, %v169
      %v173 = vsel %vm170, %v125, 0.0
      %v174 = vsel %vm171, %v132, 0.0
      %vm175 = vcmask 130048
      %v176 = vsel %vm175, %v173, 0.0
      %v177 = vsel %vm175, %v174, 0.0
      %v178 = vadd.f32 %v176, %v177
      %v179 = vrot.slane %v178, 4
      %v180 = vadd.f32 %v178, %v179
      %v181 = vrot.slane %v180, 2
      %v182 = vadd.f32 %v180, %v181
      %v183 = vrot.slane %v182, 1
      %v184 = vadd.f32 %v182, %v183
      %v185 = vsel %vm170, %v159, 0.0
      %v186 = vsel %vm171, %v160, 0.0
      %v187 = vsel %vm175, %v185, 0.0
      %v188 = vsel %vm175, %v186, 0.0
      %v189 = vadd.f32 %v187, %v188
      %v190 = vrot.slane %v189, 4
      %v191 = vadd.f32 %v189, %v190
      %v192 = vrot.slane %v191, 2
      %v193 = vadd.f32 %v191, %v192
      %v194 = vrot.slane %v193, 1
      %v195 = vadd.f32 %v193, %v194
      %v196 = vsel %vm172, %v125, 0.0
      %v197 = vsel %vm172, %v132, 0.0
      %v198 = vsel %vm175, %v196, 0.0
      %199 = vadd.xlane.f32.xlu0 %v198
      %v200 = vpop.xlane.xlu0 %199
      %v201 = vsel %vm175, %v197, 0.0
      %202 = vadd.xlane.f32.xlu0 %v201
      %v203 = vpop.xlane.xlu0 %202
      %v204 = vsel %vm172, %v157, 0.0
      %v205 = vsel %vm172, %v158, 0.0
      %v206 = vsel %vm175, %v204, 0.0
      %207 = vadd.xlane.f32.xlu0 %v206
      %v208 = vpop.xlane.xlu0 %207
      %v209 = vsel %vm175, %v205, 0.0
      %210 = vadd.xlane.f32.xlu0 %v209
      %v211 = vpop.xlane.xlu0 %210
      %v212 = vsub.f32 %v184, %v200
      %v213 = vsub.f32 %v184, %v203
      %vm214 = vcmp.gt.f32.partialorder %v212, 0.0
      %vm215 = vcmp.gt.f32.partialorder %v213, 0.0
      %vm216 = vcmp.le.f32.partialorder %v212, 0.1
      %vm217 = vcmp.le.f32.partialorder %v213, 0.1
      %vm218 = vmand %vm214, %vm216
      %vm219 = vmand %vm215, %vm217
      %v220 = vsub.f32 0.1, %v212
      %v221 = vsub.f32 0.1, %v213
      %vm222 = vcmp.gt.f32.partialorder %v220, 0.0
      %vm223 = vcmp.gt.f32.partialorder %v221, 0.0
      %vm224 = vmand %vm218, %vm222
      %vm225 = vmand %vm219, %vm223
      %v226 = vmul.f32 %v208, %v195
      %v227 = vmul.f32 %v211, %v195
      %v228 = vsel %vm224, 1.0, 0.0
      %v229 = vsel %vm225, 1.0, 0.0
      %v230 = vmul.f32 %v226, %v228
      %v231 = vmul.f32 %v227, %v229
      %v232 = vmul.f32 %v230, %v220
      %v233 = vmul.f32 %v231, %v221
      %v234 = vsel %vm175, %v232, 0.0
      %v235 = vsel %vm175, %v233, 0.0
      %v236 = vadd.f32 %v234, %v235
      %237 = vadd.xlane.f32.xlu0 %v236
      %v238 = vpop.xlane.xlu0 %237
      %v239 = vrot.slane %v238, 4
      %v240 = vadd.f32 %v238, %v239
      %v241 = vrot.slane %v240, 2
      %v242 = vadd.f32 %v240, %v241
      %v243 = vrot.slane %v242, 1
      %v244 = vadd.f32 %v242, %v243
      %s245 = vtos %v244
      %v246 = vstv %s245
      %v247 = vadd.f32 %v167, %v246
      %v248 = vsel %vm175, %v230, 0.0
      %v249 = vsel %vm175, %v231, 0.0
      %v250 = vadd.f32 %v248, %v249
      %251 = vadd.xlane.f32.xlu0 %v250
      %v252 = vpop.xlane.xlu0 %251
      %v253 = vrot.slane %v252, 4
      %v254 = vadd.f32 %v252, %v253
      %v255 = vrot.slane %v254, 2
      %v256 = vadd.f32 %v254, %v255
      %v257 = vrot.slane %v256, 1
      %v258 = vadd.f32 %v256, %v257
      %s259 = vtos %v258
      %v260 = vstv %s259
      %v261 = vadd.f32 %v168, %v260
    $region18: #{tpu_custom_call.1} parent=1 // loop_footer
      %s166 = sadd.s32 1, %s162
    $region19: #{tpu_custom_call.1} parent=1 // loop_footer_branch
      %161 = sbr.rel target = $region15
    $region20: #{tpu_custom_call.1} parent=1 // loop_exit
      _
    %v262 = vmax.f32 %v168, 1.0
    %v263 = vrcp.pop %v262
    %v264 = vmul.f32 %v167, %v263
    %vm265 = vcmask 0
    %266 = vst.msk [vmem:[#allocation2] sm:$0x1] %vm265, %v264
    // Predicated region
    $region21: #{tpu_custom_call.1} parent=1 // pred_check
      _
    $region22: #{tpu_custom_call.1} parent=1 // pred_check_branch
      %268 = sbr.rel (0) target = $region24
    $region23: #{tpu_custom_call.1} parent=1 // pred_region
      %s270 = ssub.s32 16, 16
      %271 = vsyncadd [#allocation3], %s270
      %s273 = sshll.u32 [#allocation2], 4
      %s274 = int_to_ptr.vmem [resolvable:$true] %s273
      %276 = dma.vmem_to_hbm [thread:$0]  %s274, 16, %s3, [#allocation3]
    $region24: #{tpu_custom_call.1} parent=1 // pred_fallthru
      _
    // Predicated region
    $region25: #{tpu_custom_call.1} parent=1 // pred_check
      _
    $region26: #{tpu_custom_call.1} parent=1 // pred_check_branch
      %278 = sbr.rel (0) target = $region28
    $region27: #{tpu_custom_call.1} parent=1 // pred_region
      %279 = dma.done [#allocation3], 16
    $region28: #{tpu_custom_call.1} parent=1 // pred_fallthru
      _
    %280 = vsyncpa [#allocation3], 1

</llo_original>
